<compile_context>
chip_gen: v7x
topology: tpu7x:2x2x1
jax: 0.10.0
libtpu: 0.0.40
codegen_flags: <defaults>
</compile_context>

<pallas_src>
import functools
import math

import jax
import jax.numpy as jnp
from jax.experimental import pallas as pl
from jax.experimental.pallas import tpu as pltpu

_MIB = 1024 * 1024


def _cdiv(a, b):
    return (a + b - 1) // b


def _round_up(a, b):
    return _cdiv(a, b) * b


def _sublane_granule(dtype):
    # Native sublane tile: 8 rows for 32-bit, 16 for 16-bit dtypes.
    return 8 * max(1, 4 // jnp.dtype(dtype).itemsize)


def _vmem_budget_bytes():
    """(streaming budget, vmem_limit, capacity) for double-buffered input blocks."""
    try:
        cap = pltpu.get_tpu_info().vmem_capacity_bytes
    except Exception:
        cap = 64 * _MIB                       # conservative floor: v7x physical VMEM
    if cap >= 100 * _MIB:                     # v5e / v6e (128 MiB parts)
        return 48 * _MIB, 96 * _MIB, cap
    return 20 * _MIB, 40 * _MIB, cap          # v7x (64 MiB part)


# ----------------------------------------------------------------------------
# Lane-dense (flattened) path
# ----------------------------------------------------------------------------

_ROLL_WRAP_SHIFT = None  # cached: does roll(x, n-k)[p] fetch x[p+k]?


def _roll_fetches_next_with_wrap_shift():
    """One-time 1-vreg self check pinning pltpu.roll's rotate direction so the
    boundary masks below are always consistent with the lowering."""
    global _ROLL_WRAP_SHIFT
    if _ROLL_WRAP_SHIFT is None:
        def probe(o_ref):
            v = jax.lax.broadcasted_iota(jnp.int32, (8, 128), 1)
            o_ref[...] = pltpu.roll(v, shift=127, axis=1)

        out = pl.pallas_call(
            probe, out_shape=jax.ShapeDtypeStruct((8, 128), jnp.int32))()
        val = int(out[0, 0])
        if val == 1:
            _ROLL_WRAP_SHIFT = True      # roll(x, n-k)[p] == x[(p+k) % n]
        elif val == 127:
            _ROLL_WRAP_SHIFT = False     # roll(x, k)[p]   == x[(p+k) % n]
        else:
            raise RuntimeError("unexpected pltpu.roll semantics")
    return _ROLL_WRAP_SHIFT


def _grad_loss_kernel_flat(x_ref, t_ref, out_ref, *, W, HW, wrap_shift):
    """Blocks are (b_tile, PP), PP = round_up(H*W, 128), batch on sublanes.

    Gradients on the flattened pixel axis, via XLU rolls + iota masks:
      dh[p] = d[p+1] - d[p]  valid iff (p % W) != W-1 and p < H*W
      dv[p] = d[p+W] - d[p]  valid iff p < (H-1)*W
    so no unaligned lane slices are ever materialized.
    """
    c = pl.program_id(1)                  # reduction ("arbitrary") axis

    @pl.when(c == 0)
    def _init():
        out_ref[...] = jnp.zeros_like(out_ref)

    # Stream native dtype, compute in f32; d = x - t formed once.
    d = x_ref[...].astype(jnp.float32) - t_ref[...].astype(jnp.float32)
    PP = d.shape[-1]

    pos = jax.lax.broadcasted_iota(jnp.int32, (1, PP), 1)
    if (W & (W - 1)) == 0:                # power-of-two W: pure bitwise column index
        col = jnp.bitwise_and(pos, W - 1)
    else:
        col = pos % W
    mh = jnp.logical_and(col != W - 1, pos < HW)   # not last column, inside image
    mv = pos < HW - W                              # not last row (nor lane padding)

    s1 = PP - 1 if wrap_shift else 1
    sW = PP - W if wrap_shift else W
    nxt1 = pltpu.roll(d, shift=s1, axis=1)                     # nxt1[p] = d[p+1]
    nxtw = pltpu.roll(d, shift=sW, axis=1) if W < PP else d    # nxtw[p] = d[p+W]

    dh = jnp.where(mh, nxt1 - d, 0.0)
    dv = jnp.where(mv, nxtw - d, 0.0)

    # Per-step full reduce is ~1/1024 VPU op per pixel + a handful of XLU ops,
    # hidden under the multi-MB block DMA; the only loop-carried state is one f32.
    out_ref[...] += jnp.sum(dh * dh + dv * dv)


def _loss_flat(x, t, H, W, budget, limit):
    NC = x.shape[0]
    HW = H * W
    dt = x.dtype
    itemsize = jnp.dtype(dt).itemsize
    sub = _sublane_granule(dt)

    wrap_shift = _roll_fetches_next_with_wrap_shift()

    x2 = x.reshape(NC, HW)
    t2 = t.reshape(NC, HW)
    PP = _round_up(HW, 128)
    if PP != HW:
        # Zero lane padding; masked off in the kernel (only copies when needed).
        x2 = jnp.pad(x2, ((0, 0), (0, PP - HW)))
        t2 = jnp.pad(t2, ((0, 0), (0, PP - HW)))

    per_buffer = budget // 4              # 2 inputs x 2 pipeline buffers
    row_bytes = PP * itemsize             # true (padded) VMEM bytes per image row
    n_split = 2 if NC >= 2 * sub else 1   # feeds both TensorCores on v7x
    per_split = _cdiv(NC, n_split)
    b_budget = max(sub, (per_buffer // row_bytes) // sub * sub)
    b_tile = min(b_budget, _round_up(per_split, sub))
    n_chunks = _cdiv(per_split, b_tile)
    nc_pad = n_split * n_chunks * b_tile
    if nc_pad != NC:
        # Zero-padded images contribute exactly zero to the loss.
        x2 = jnp.pad(x2, ((0, nc_pad - NC), (0, 0)))
        t2 = jnp.pad(t2, ((0, nc_pad - NC), (0, 0)))

    kernel = functools.partial(
        _grad_loss_kernel_flat, W=W, HW=HW, wrap_shift=wrap_shift)
    in_spec = pl.BlockSpec((b_tile, PP), lambda s, c: (s * n_chunks + c, 0))

    out = pl.pallas_call(
        kernel,
        out_shape=jax.ShapeDtypeStruct((n_split, 1, 1), jnp.float32),
        grid=(n_split, n_chunks),
        in_specs=[in_spec, in_spec],
        # Same output block across the reduction axis -> resident accumulator.
        out_specs=pl.BlockSpec((1, 1, 1), lambda s, c: (s, 0, 0)),
        compiler_params=pltpu.CompilerParams(
            # TODO(synk): if xprof shows only one v7x TensorCore streaming,
            # switch this axis to pltpu.CORE_PARALLEL / pl.core_map; plain
            # "parallel" is kept because it is safe on single-core v5e/v6e.
            dimension_semantics=("parallel", "arbitrary"),
            vmem_limit_bytes=limit,
        ),
    )(x2, t2)
    return jnp.sum(out)


# ----------------------------------------------------------------------------
# Whole-plane (b, H, W) path: very large images, and lowering safety net
# ----------------------------------------------------------------------------

def _grad_loss_kernel_3d(x_ref, t_ref, out_ref, acc_ref):
    i = pl.program_id(1)

    @pl.when(i == 0)
    def _init():
        acc_ref[...] = jnp.zeros_like(acc_ref)

    d = x_ref[...].astype(jnp.float32) - t_ref[...].astype(jnp.float32)
    _, H, W = d.shape

    if W > 1:
        dh = d[:, :, 1:] - d[:, :, :-1]                      # (B, H, W-1)
        acc_ref[:, : W - 1] += jnp.sum(jnp.sum(dh * dh, axis=0), axis=0,
                                       keepdims=True)
    if H > 1:
        dv = d[:, 1:, :] - d[:, :-1, :]                      # (B, H-1, W)
        acc_ref[...] += jnp.sum(jnp.sum(dv * dv, axis=0), axis=0, keepdims=True)

    @pl.when(i == pl.num_programs(1) - 1)
    def _finalize():
        out_ref[...] = jnp.zeros_like(out_ref) + jnp.sum(acc_ref[...])


def _loss_3d(x, t, budget, limit, cap):
    NC, H, W = x.shape
    dt = x.dtype
    itemsize = jnp.dtype(dt).itemsize
    sub = _sublane_granule(dt)

    per_buffer = budget // 4
    # Padded VMEM footprint of one plane: sublane dim to the dtype granule,
    # lane dim to 128 (size blocks against what VMEM actually allocates).
    plane_pad = _round_up(H, sub) * _round_up(W, 128) * itemsize

    n_split = 2 if NC >= 2 else 1
    b_tile = max(1, min(_cdiv(NC, n_split), per_buffer // max(1, plane_pad)))
    blk_bytes = b_tile * plane_pad
    if 4 * blk_bytes + 16 * _MIB > limit:
        # Single plane exceeds the streaming budget: raise the limit toward the
        # physical capacity instead of overshooting silently.
        # TODO(synk): H-tile huge planes (with a carried boundary row) instead
        # of relying on a raised VMEM limit; not needed for typical images.
        limit = min(cap - 8 * _MIB, 4 * blk_bytes + 16 * _MIB)
    n_chunks = _cdiv(_cdiv(NC, n_split), b_tile)
    nc_pad = n_split * n_chunks * b_tile
    if nc_pad != NC:
        pad = ((0, nc_pad - NC), (0, 0), (0, 0))
        x = jnp.pad(x, pad)
        t = jnp.pad(t, pad)

    in_spec = pl.BlockSpec((b_tile, H, W), lambda s, c: (s * n_chunks + c, 0, 0))
    out = pl.pallas_call(
        _grad_loss_kernel_3d,
        out_shape=jax.ShapeDtypeStruct((n_split, 1, 1), jnp.float32),
        grid=(n_split, n_chunks),
        in_specs=[in_spec, in_spec],
        out_specs=pl.BlockSpec((1, 1, 1), lambda s, c: (s, 0, 0)),
        scratch_shapes=[pltpu.VMEM((1, W), jnp.float32)],
        compiler_params=pltpu.CompilerParams(
            dimension_semantics=("parallel", "arbitrary"),
            vmem_limit_bytes=limit,
        ),
    )(x, t)
    return jnp.sum(out)


# ----------------------------------------------------------------------------
# Public wrapper
# ----------------------------------------------------------------------------

def image_gradient_loss(inputs, targets):
    """Pallas implementation of ImageGradientLoss.forward for (..., H, W) inputs."""
    if inputs.shape != targets.shape:
        raise ValueError("inputs and targets must have the same shape")
    if inputs.ndim < 2:
        raise ValueError("expected inputs of shape (..., H, W)")
    *lead, H, W = inputs.shape
    NC = math.prod(lead) if lead else 1

    # Stream the native dtype (cast to f32 in-kernel); wrapper-cast only dtypes
    # the kernel does not stream directly.
    supported = (jnp.dtype(jnp.float32), jnp.dtype(jnp.bfloat16))
    if (inputs.dtype != targets.dtype
            or jnp.dtype(inputs.dtype) not in supported):
        inputs = inputs.astype(jnp.float32)
        targets = targets.astype(jnp.float32)

    x = inputs.reshape(NC, H, W)
    t = targets.reshape(NC, H, W)

    budget, limit, cap = _vmem_budget_bytes()
    per_buffer = budget // 4
    itemsize = jnp.dtype(x.dtype).itemsize
    sub = _sublane_granule(x.dtype)
    PP = _round_up(H * W, 128)

    if sub * PP * itemsize <= per_buffer:
        # Lane-dense path: whole (padded) plane on the lane axis, batch on
        # sublanes -- the common case, and the one that fixes the up-to-8x
        # vreg/VMEM waste of small-W images.
        try:
            return _loss_flat(x, t, H, W, budget, limit)
        except Exception:
            # Safety net: if roll/layout lowering is rejected on some TPU
            # generation, fall back to the proven whole-plane formulation.
            pass
    # Large planes (W is then almost always >= 128, already lane-dense).
    return _loss_3d(x, t, budget, limit, cap)


def _ref_loss(inputs, targets):
    def dh(v):
        return v[..., :, 1:] - v[..., :, :-1]

    def dv(v):
        return v[..., 1:, :] - v[..., :-1, :]

    return (jnp.sum((dh(inputs) - dh(targets)) ** 2)
            + jnp.sum((dv(inputs) - dv(targets)) ** 2))


if __name__ == "__main__":
    key = jax.random.PRNGKey(0)
    k1, k2 = jax.random.split(key)
    # Small NCHW shapes consistent with an image loss
    inputs = jax.random.normal(k1, (2, 4, 16, 16), dtype=jnp.float32)
    targets = jax.random.normal(k2, (2, 4, 16, 16), dtype=jnp.float32)

    loss = image_gradient_loss(inputs, targets)
    loss = jax.block_until_ready(loss)

    ref = _ref_loss(inputs, targets)
    assert jnp.allclose(loss, ref, rtol=1e-5, atol=1e-3), (loss, ref)

    print("KERNEL_OK")
</pallas_src>

<mosaic_0001>
module attributes {stable_mosaic.version = 11 : i64} {
  func.func @_grad_loss_kernel_3d(%arg0: i32, %arg1: i32, %arg2: memref<4x16x16xf32, #tpu.memory_space<vmem>>, %arg3: memref<4x16x16xf32, #tpu.memory_space<vmem>>, %arg4: memref<1x1x1xf32, #tpu.memory_space<vmem>>, %arg5: memref<1x16xf32, #tpu.memory_space<vmem>>) attributes {dimension_semantics = [#tpu.dimension_semantics<parallel>, #tpu.dimension_semantics<arbitrary>], iteration_bounds = array<i64: 2, 1>, scalar_prefetch = 0 : i64, scratch_operands = 1 : i64, tpu.core_type = #tpu.core_type<tc>, window_params = [{transform_indices = @transform_0, window_bounds = array<i64: 4, 16, 16>}, {transform_indices = @transform_1, window_bounds = array<i64: 4, 16, 16>}, {transform_indices = @transform_2, window_bounds = array<i64: 1, 1, 1>}]} {
    %c0_i32 = arith.constant 0 : i32
    %0 = arith.cmpi eq, %arg1, %c0_i32 : i32
    %1 = arith.extui %0 : i1 to i32
    %c0_i32_0 = arith.constant 0 : i32
    %2 = arith.cmpi ne, %1, %c0_i32_0 : i32
    scf.if %2 {
      %cst_19 = arith.constant 0.000000e+00 : f32
      %29 = vector.broadcast %cst_19 : f32 to vector<1x16xf32>
      %c0_20 = arith.constant 0 : index
      %c0_21 = arith.constant 0 : index
      %30 = vector.load %arg5[%c0_20, %c0_21] : memref<1x16xf32, #tpu.memory_space<vmem>>, vector<1x16xf32>
      tpu.vector_store %arg5[%c0_20, %c0_21], %29 {strides = array<i32>} : memref<1x16xf32, #tpu.memory_space<vmem>>, vector<1x16xf32>,
    } else {
    }
    %c0 = arith.constant 0 : index
    %c0_1 = arith.constant 0 : index
    %c0_2 = arith.constant 0 : index
    %3 = vector.load %arg2[%c0, %c0_1, %c0_2] : memref<4x16x16xf32, #tpu.memory_space<vmem>>, vector<4x16x16xf32>
    %c0_3 = arith.constant 0 : index
    %c0_4 = arith.constant 0 : index
    %c0_5 = arith.constant 0 : index
    %4 = vector.load %arg3[%c0_3, %c0_4, %c0_5] : memref<4x16x16xf32, #tpu.memory_space<vmem>>, vector<4x16x16xf32>
    %5 = arith.subf %3, %4 : vector<4x16x16xf32>
    %6 = vector.extract_strided_slice %5 {offsets = [0, 0, 1], sizes = [4, 16, 15], strides = [1, 1, 1]} : vector<4x16x16xf32> to vector<4x16x15xf32>
    %7 = vector.extract_strided_slice %5 {offsets = [0, 0, 0], sizes = [4, 16, 15], strides = [1, 1, 1]} : vector<4x16x16xf32> to vector<4x16x15xf32>
    %8 = arith.subf %6, %7 : vector<4x16x15xf32>
    %c0_6 = arith.constant 0 : index
    %c0_7 = arith.constant 0 : index
    %9 = vector.load %arg5[%c0_6, %c0_7] : memref<1x16xf32, #tpu.memory_space<vmem>>, vector<1x15xf32>
    %10 = arith.mulf %8, %8 : vector<4x16x15xf32>
    %cst = arith.constant dense<0.000000e+00> : vector<16x15xf32>
    %11 = vector.multi_reduction <add>, %10, %cst [0] : vector<4x16x15xf32> to vector<16x15xf32>
    %cst_8 = arith.constant dense<0.000000e+00> : vector<15xf32>
    %12 = vector.multi_reduction <add>, %11, %cst_8 [0] : vector<16x15xf32> to vector<15xf32>
    %13 = vector.shape_cast %12 : vector<15xf32> to vector<1x15xf32>
    %14 = arith.addf %9, %13 : vector<1x15xf32>
    %c0_9 = arith.constant 0 : index
    %c0_10 = arith.constant 0 : index
    %15 = vector.load %arg5[%c0_9, %c0_10] : memref<1x16xf32, #tpu.memory_space<vmem>>, vector<1x15xf32>
    tpu.vector_store %arg5[%c0_9, %c0_10], %14 {strides = array<i32>} : memref<1x16xf32, #tpu.memory_space<vmem>>, vector<1x15xf32>,
    %16 = vector.extract_strided_slice %5 {offsets = [0, 1, 0], sizes = [4, 15, 16], strides = [1, 1, 1]} : vector<4x16x16xf32> to vector<4x15x16xf32>
    %17 = vector.extract_strided_slice %5 {offsets = [0, 0, 0], sizes = [4, 15, 16], strides = [1, 1, 1]} : vector<4x16x16xf32> to vector<4x15x16xf32>
    %18 = arith.subf %16, %17 : vector<4x15x16xf32>
    %c0_11 = arith.constant 0 : index
    %c0_12 = arith.constant 0 : index
    %19 = vector.load %arg5[%c0_11, %c0_12] : memref<1x16xf32, #tpu.memory_space<vmem>>, vector<1x16xf32>
    %20 = arith.mulf %18, %18 : vector<4x15x16xf32>
    %cst_13 = arith.constant dense<0.000000e+00> : vector<15x16xf32>
    %21 = vector.multi_reduction <add>, %20, %cst_13 [0] : vector<4x15x16xf32> to vector<15x16xf32>
    %cst_14 = arith.constant dense<0.000000e+00> : vector<16xf32>
    %22 = vector.multi_reduction <add>, %21, %cst_14 [0] : vector<15x16xf32> to vector<16xf32>
    %23 = vector.shape_cast %22 : vector<16xf32> to vector<1x16xf32>
    %24 = arith.addf %19, %23 : vector<1x16xf32>
    %c0_15 = arith.constant 0 : index
    %c0_16 = arith.constant 0 : index
    %25 = vector.load %arg5[%c0_15, %c0_16] : memref<1x16xf32, #tpu.memory_space<vmem>>, vector<1x16xf32>
    tpu.vector_store %arg5[%c0_15, %c0_16], %24 {strides = array<i32>} : memref<1x16xf32, #tpu.memory_space<vmem>>, vector<1x16xf32>,
    %c0_i32_17 = arith.constant 0 : i32
    %26 = arith.cmpi eq, %arg1, %c0_i32_17 : i32
    %27 = arith.extui %26 : i1 to i32
    %c0_i32_18 = arith.constant 0 : i32
    %28 = arith.cmpi ne, %27, %c0_i32_18 : i32
    scf.if %28 {
      %cst_19 = arith.constant 0.000000e+00 : f32
      %29 = vector.broadcast %cst_19 : f32 to vector<1x1x1xf32>
      %c0_20 = arith.constant 0 : index
      %c0_21 = arith.constant 0 : index
      %30 = vector.load %arg5[%c0_20, %c0_21] : memref<1x16xf32, #tpu.memory_space<vmem>>, vector<1x16xf32>
      %31 = vector.shape_cast %30 : vector<1x16xf32> to vector<1x1x16xf32>
      %cst_22 = arith.constant dense<0.000000e+00> : vector<1xf32>
      %32 = vector.multi_reduction <add>, %31, %cst_22 [1, 2] : vector<1x1x16xf32> to vector<1xf32>
      %33 = vector.shape_cast %32 : vector<1xf32> to vector<1x1x1xf32>
      %34 = vector.extract %33[0, 0, 0] : f32 from vector<1x1x1xf32>
      %35 = vector.broadcast %34 : f32 to vector<1x1x1xf32>
      %36 = arith.addf %29, %35 : vector<1x1x1xf32>
      %c0_23 = arith.constant 0 : index
      %c0_24 = arith.constant 0 : index
      %c0_25 = arith.constant 0 : index
      %37 = vector.load %arg4[%c0_23, %c0_24, %c0_25] : memref<1x1x1xf32, #tpu.memory_space<vmem>>, vector<1x1x1xf32>
      tpu.vector_store %arg4[%c0_23, %c0_24, %c0_25], %36 {strides = array<i32>} : memref<1x1x1xf32, #tpu.memory_space<vmem>>, vector<1x1x1xf32>,
    } else {
    }
    return
  }
  func.func @transform_0(%arg0: i32, %arg1: i32) -> (i32, i32, i32) {
    %c1_i32 = arith.constant 1 : i32
    %0 = arith.muli %arg0, %c1_i32 : i32
    %1 = arith.addi %0, %arg1 : i32
    %c0_i32 = arith.constant 0 : i32
    %c0_i32_0 = arith.constant 0 : i32
    %c0_i32_1 = arith.constant 0 : i32
    return %1, %c0_i32, %c0_i32_0 : i32, i32, i32
  }
  func.func @transform_1(%arg0: i32, %arg1: i32) -> (i32, i32, i32) {
    %c1_i32 = arith.constant 1 : i32
    %0 = arith.muli %arg0, %c1_i32 : i32
    %1 = arith.addi %0, %arg1 : i32
    %c0_i32 = arith.constant 0 : i32
    %c0_i32_0 = arith.constant 0 : i32
    %c0_i32_1 = arith.constant 0 : i32
    return %1, %c0_i32, %c0_i32_0 : i32, i32, i32
  }
  func.func @transform_2(%arg0: i32, %arg1: i32) -> (i32, i32, i32) {
    %c0_i32 = arith.constant 0 : i32
    %c0_i32_0 = arith.constant 0 : i32
    %c0_i32_1 = arith.constant 0 : i32
    return %arg0, %c0_i32, %c0_i32_0 : i32, i32, i32
  }
}

</mosaic_0001>

<llo_original>
// kernel: tpu_custom_call.1
$region0: #{tpu_custom_call.1}
  #allocation0 [shape = 'u32[]', space=smem, size = 0x4, offset = 0x4, fixed_abs, tag = 'smem constant byte address 0x4 - core index']
  #allocation1 [shape = 'u32[144,128]{1,0:T(1,128)}', space=vmem, size = 0x12000, scoped, tag = 'internal scratch']
  #allocation2 [shape = 'f32[1,16]{1,0:T(1,128)}', space=vmem, size = 0x200, scoped, tag = 'scratch operand']
  %s0 = inlined_call_operand.hbm [shape: f32[8,16,16], index: 0, kind: input, shape index: {}]
  %s1 = inlined_call_operand.hbm [shape: f32[8,16,16], index: 1, kind: input, shape index: {}]
  %s2 = inlined_call_operand.vmem [shape: f32[2,1,1], index: 2, kind: output, shape index: {}]
  %s3 = sld [smem:[#allocation0]]
  $region57: #{tpu_custom_call.1} parent=0
    _
  %s5 = ssub.s32 1, %s3
  %s6 = scalar_select 0, %s5, %s3
  $region1: #{tpu_custom_call.1} parent=0
    #allocation3 [shape = 'u8[65536]{0}', space=vmem, size = 0x10000, scoped, tag = 'input window, operand 0']
    #allocation4 [shape = 's32[2]{0}', space=sflag, size = 0x8, scoped, tag = 'scoped memory for tpu_custom_call.1']
    #allocation5 [shape = 'u8[65536]{0}', space=vmem, size = 0x10000, scoped, tag = 'input window, operand 1']
    #allocation6 [shape = 's32[2]{0}', space=sflag, size = 0x8, scoped, tag = 'scoped memory for tpu_custom_call.1']
    %7 = vsyncpa [#allocation4], 0
    %s8 = scalar_lea.sflag [#allocation4], 1
    %9 = vsyncpa %s8, 0
    %10 = vsyncpa [#allocation6], 0
    %s11 = scalar_lea.sflag [#allocation6], 1
    %12 = vsyncpa %s11, 0
    loop: start=0, step=1, limit=4
    $region2: #{tpu_custom_call.1} parent=1 // loop_pre_header
      _
    $region3: #{tpu_custom_call.1} parent=1 // loop_header
      %s14 = sphi 0, %s18
      %p15 = scmp.ge.s32.totalorder %s14, 4
      %s21 = sphi 0, %s33
      %s22 = sphi 0, %s29
      %s23 = sphi 0, %s21
      %s24 = sphi 0, %s22
      %s25 = sphi 0, %s23
      %s26 = sphi 0, %s24
      %s38 = sphi 0, %s40
      %s41 = sphi 0, %s38
      %s42 = sphi 0, %s41
      %s58 = sphi 0, %s42
      %s66 = sphi 0, %s68
      %s69 = sphi 0, %s66
      %s70 = sphi 0, %s69
      %s86 = sphi 0, %s70
      %s92 = sphi 0, %s94
      %s95 = sphi 0, %s92
      %s96 = sphi 0, %s95
      %s112 = sphi 0, %s96
    $region4: #{tpu_custom_call.1} parent=1 // loop_header_branch
      %17 = sbr.rel (%p15) target = $region8
    $region5: #{tpu_custom_call.1} parent=1 // loop_body
      %s19 = ssub.s32 %s14, 1
      %s20 = ssub.s32 %s14, 2
      %s27 = sadd.s32 1, %s22
      %p28 = scmp.ge.s32.totalorder %s27, 1
      %s29 = scalar_select %p28, 0, %s27
      %s30 = sadd.s32 1, %s21
      %s31 = scalar_select %p28, %s30, %s21
      %p32 = scmp.ge.s32.totalorder %s31, 2
      %s33 = scalar_select %p32, 0, %s31
      %s34 = sadd.s32 %s21, %s22
      %s35 = sadd.s32 %s33, %s29
      %s36 = ssub.s32 %s34, %s35
      %p37 = scmp.eq.s32.totalorder %s36, 0
      %s39 = sadd.s32 %s38, 1
      %s40 = scalar_select %p37, %s38, %s39
      %p43 = pneg %p37
      %p44 = scmp.eq.s32.totalorder %s14, 1
      %p45 = por %p43, %p44
      %p46 = scmp.ne.s32.totalorder %s38, %s41
      %p47 = scmp.eq.s32.totalorder %s14, 0
      %p48 = por %p46, %p47
      %p49 = scmp.ne.s32.totalorder %s38, %s41
      %p50 = scmp.eq.s32.totalorder %s19, 1
      %p51 = por %p49, %p50
      %p52 = scmp.ne.s32.totalorder %s41, %s42
      %p53 = scmp.eq.s32.totalorder %s19, 0
      %p54 = por %p52, %p53
      %p55 = scmp.ne.s32.totalorder %s41, %s42
      %p56 = scmp.eq.s32.totalorder %s20, 1
      %p57 = por %p55, %p56
      %p59 = scmp.ne.s32.totalorder %s42, %s58
      %p60 = scmp.eq.s32.totalorder %s20, 0
      %p61 = por %p59, %p60
      %s62 = sadd.s32 %s21, %s22
      %s63 = sadd.s32 %s33, %s29
      %s64 = ssub.s32 %s62, %s63
      %p65 = scmp.eq.s32.totalorder %s64, 0
      %s67 = sadd.s32 %s66, 1
      %s68 = scalar_select %p65, %s66, %s67
      %p71 = pneg %p65
      %p72 = scmp.eq.s32.totalorder %s14, 1
      %p73 = por %p71, %p72
      %p74 = scmp.ne.s32.totalorder %s66, %s69
      %p75 = scmp.eq.s32.totalorder %s14, 0
      %p76 = por %p74, %p75
      %p77 = scmp.ne.s32.totalorder %s66, %s69
      %p78 = scmp.eq.s32.totalorder %s19, 1
      %p79 = por %p77, %p78
      %p80 = scmp.ne.s32.totalorder %s69, %s70
      %p81 = scmp.eq.s32.totalorder %s19, 0
      %p82 = por %p80, %p81
      %p83 = scmp.ne.s32.totalorder %s69, %s70
      %p84 = scmp.eq.s32.totalorder %s20, 1
      %p85 = por %p83, %p84
      %p87 = scmp.ne.s32.totalorder %s70, %s86
      %p88 = scmp.eq.s32.totalorder %s20, 0
      %p89 = por %p87, %p88
      %s90 = ssub.s32 %s21, %s33
      %p91 = scmp.eq.s32.totalorder %s90, 0
      %s93 = sadd.s32 %s92, 1
      %s94 = scalar_select %p91, %s92, %s93
      %p97 = pneg %p91
      %p98 = scmp.eq.s32.totalorder %s14, 1
      %p99 = por %p97, %p98
      %p100 = scmp.ne.s32.totalorder %s92, %s95
      %p101 = scmp.eq.s32.totalorder %s14, 0
      %p102 = por %p100, %p101
      %p103 = scmp.ne.s32.totalorder %s92, %s95
      %p104 = scmp.eq.s32.totalorder %s19, 1
      %p105 = por %p103, %p104
      %p106 = scmp.ne.s32.totalorder %s95, %s96
      %p107 = scmp.eq.s32.totalorder %s19, 0
      %p108 = por %p106, %p107
      %p109 = scmp.ne.s32.totalorder %s95, %s96
      %p110 = scmp.eq.s32.totalorder %s20, 1
      %p111 = por %p109, %p110
      %p113 = scmp.ne.s32.totalorder %s96, %s112
      %p114 = scmp.eq.s32.totalorder %s20, 0
      %p115 = por %p113, %p114
      %p116 = scmp.le.s32.totalorder 1, %s14
      %p117 = scmp.lt.s32.totalorder %s14, 3
      %p118 = pnand %p116, %p117
      %p119 = pneg %p118
      // Predicated region
      $region9: #{tpu_custom_call.1} parent=5 // pred_check
        _
      $region10: #{tpu_custom_call.1} parent=5 // pred_check_branch
        %121 = sbr.rel (%p118) target = $region12
      $region11: #{tpu_custom_call.1} parent=5 // pred_region
        %s122 = ssub.s32 %s14, 1
      $region12: #{tpu_custom_call.1} parent=5 // pred_fallthru
        _
      %p123 = scmp.lt.s32.totalorder %s14, 2
      // Predicated region
      $region13: #{tpu_custom_call.1} parent=5 // pred_check
        %p124 = pneg %p123
      $region14: #{tpu_custom_call.1} parent=5 // pred_check_branch
        %126 = sbr.rel (%p124) target = $region16
      $region15: #{tpu_custom_call.1} parent=5 // pred_region
        // Predicated region
        $region17: #{tpu_custom_call.1} parent=15 // pred_check
          %p127 = pneg %p48
        $region18: #{tpu_custom_call.1} parent=15 // pred_check_branch
          %129 = sbr.rel (%p127) target = $region20
        $region19: #{tpu_custom_call.1} parent=15 // pred_region
          %s130 = sand.u32 %s38, 1
          %s131 = scalar_lea.sflag [#allocation4], %s130
          %s132 = sand.u32 %s38, 1
          %s133 = smul.addr %s132, 64
          %s134 = scalar_lea.vmem [#allocation3], %s133
          %s135 = sadd.s32 %s21, %s22
          %s136 = smul.u32 4, %s135
          %s138 = ssub.s32 1024, 1024
          %139 = vsyncadd %s131, %s138
          %s140 = smul.addr %s136, 2
          %s141 = smul.addr %s140, 128
          %s142 = scalar_lea.hbm %s0, %s141
          %s143 = sshll.u32 %s134, 4
          %s144 = int_to_ptr.vmem [resolvable:$true] %s143
          %149 = dma.hbm_to_vmem [thread:$0]  %s142, 1024, %s144, %s131, 128, 128, 8
        $region20: #{tpu_custom_call.1} parent=15 // pred_fallthru
          _
        // Predicated region
        $region21: #{tpu_custom_call.1} parent=15 // pred_check
          %p150 = pneg %p76
        $region22: #{tpu_custom_call.1} parent=15 // pred_check_branch
          %152 = sbr.rel (%p150) target = $region24
        $region23: #{tpu_custom_call.1} parent=15 // pred_region
          %s153 = sand.u32 %s66, 1
          %s154 = scalar_lea.sflag [#allocation6], %s153
          %s155 = sand.u32 %s66, 1
          %s156 = smul.addr %s155, 64
          %s157 = scalar_lea.vmem [#allocation5], %s156
          %s158 = sadd.s32 %s21, %s22
          %s159 = smul.u32 4, %s158
          %s161 = ssub.s32 1024, 1024
          %162 = vsyncadd %s154, %s161
          %s163 = smul.addr %s159, 2
          %s164 = smul.addr %s163, 128
          %s165 = scalar_lea.hbm %s1, %s164
          %s166 = sshll.u32 %s157, 4
          %s167 = int_to_ptr.vmem [resolvable:$true] %s166
          %172 = dma.hbm_to_vmem [thread:$0]  %s165, 1024, %s167, %s154, 128, 128, 8
        $region24: #{tpu_custom_call.1} parent=15 // pred_fallthru
          _
      $region16: #{tpu_custom_call.1} parent=5 // pred_fallthru
        _
      %p173 = scmp.le.s32.totalorder 1, %s14
      %p174 = scmp.lt.s32.totalorder %s14, 3
      %p175 = pnand %p173, %p174
      %p176 = pneg %p175
      // Predicated region
      $region25: #{tpu_custom_call.1} parent=5 // pred_check
        _
      $region26: #{tpu_custom_call.1} parent=5 // pred_check_branch
        %178 = sbr.rel (%p175) target = $region28
      $region27: #{tpu_custom_call.1} parent=5 // pred_region
        %s179 = ssub.s32 %s14, 1
        %s180 = sand.u32 %s41, 1
        %s181 = scalar_lea.sflag [#allocation4], %s180
        %s182 = sand.u32 %s41, 1
        %s183 = smul.addr %s182, 64
        %s184 = scalar_lea.vmem [#allocation3], %s183
        // Predicated region
        $region29: #{tpu_custom_call.1} parent=27 // pred_check
          %p185 = pneg %p54
        $region30: #{tpu_custom_call.1} parent=27 // pred_check_branch
          %187 = sbr.rel (%p185) target = $region32
        $region31: #{tpu_custom_call.1} parent=27 // pred_region
          %188 = dma.done %s181, 1024
        $region32: #{tpu_custom_call.1} parent=27 // pred_fallthru
          _
        %s189 = sand.u32 %s69, 1
        %s190 = scalar_lea.sflag [#allocation6], %s189
        %s191 = sand.u32 %s69, 1
        %s192 = smul.addr %s191, 64
        %s193 = scalar_lea.vmem [#allocation5], %s192
        // Predicated region
        $region33: #{tpu_custom_call.1} parent=27 // pred_check
          %p194 = pneg %p82
        $region34: #{tpu_custom_call.1} parent=27 // pred_check_branch
          %196 = sbr.rel (%p194) target = $region36
        $region35: #{tpu_custom_call.1} parent=27 // pred_region
          %197 = dma.done %s190, 1024
        $region36: #{tpu_custom_call.1} parent=27 // pred_fallthru
          _
        %s198 = sand.u32 %s41, 1
        %s199 = scalar_lea.sflag [#allocation4], %s198
        %s200 = sand.u32 %s41, 1
        %s201 = smul.addr %s200, 64
        %s202 = scalar_lea.vmem [#allocation3], %s201
        %p203 = pneg %p54
        %p204 = pneg %p51
        %s205 = sand.u32 %s69, 1
        %s206 = scalar_lea.sflag [#allocation6], %s205
        %s207 = sand.u32 %s69, 1
        %s208 = smul.addr %s207, 64
        %s209 = scalar_lea.vmem [#allocation5], %s208
        %p210 = pneg %p82
        %p211 = pneg %p79
        %p212 = pneg %p108
        %p213 = pneg %p105
        %p214 = scmp.lt.s32.totalorder %s23, 1
        %s215 = scalar_select %p214, %s23, 1
        %s216 = scalar_lea.vmem %s2, %s215
        %s217 = sadd.s32 %s23, %s24
        %s218 = smul.u32 4, %s217
        %s219 = sadd.s32 %s23, %s24
        %s220 = smul.u32 4, %s219
        %p221 = scmp.lt.s32.totalorder %s23, 1
        %s222 = scalar_select %p221, %s23, 1
        %s223 = scalar_lea.vmem %s2, %s222
        %p224 = scmp.eq.s32.totalorder %s24, 0
        // Predicated region
        $region37: #{tpu_custom_call.1} parent=27 // pred_check
          %p225 = pneg %p224
        $region38: #{tpu_custom_call.1} parent=27 // pred_check_branch
          %227 = sbr.rel (%p225) target = $region40
        $region39: #{tpu_custom_call.1} parent=27 // pred_region
          %vm228 = vcmask 122880
          %229 = vst.msk [vmem:[#allocation2] sm:$0x1] %vm228, 0.0
        $region40: #{tpu_custom_call.1} parent=27 // pred_fallthru
          _
        %v230 = vld [vmem:[%s184] sm:$0xff]
        %v231 = vld [vmem:[%s184 + $0x8] sm:$0xff]
        %v232 = vld [vmem:[%s184 + $0x10] sm:$0xff]
        %v233 = vld [vmem:[%s184 + $0x18] sm:$0xff]
        %v234 = vld [vmem:[%s184 + $0x20] sm:$0xff]
        %v235 = vld [vmem:[%s184 + $0x28] sm:$0xff]
        %v236 = vld [vmem:[%s184 + $0x30] sm:$0xff]
        %v237 = vld [vmem:[%s184 + $0x38] sm:$0xff]
        %v238 = vld [vmem:[%s193] sm:$0xff]
        %v239 = vld [vmem:[%s193 + $0x8] sm:$0xff]
        %v240 = vld [vmem:[%s193 + $0x10] sm:$0xff]
        %v241 = vld [vmem:[%s193 + $0x18] sm:$0xff]
        %v242 = vld [vmem:[%s193 + $0x20] sm:$0xff]
        %v243 = vld [vmem:[%s193 + $0x28] sm:$0xff]
        %v244 = vld [vmem:[%s193 + $0x30] sm:$0xff]
        %v245 = vld [vmem:[%s193 + $0x38] sm:$0xff]
        %v246 = vsub.f32 %v230, %v238
        %v247 = vsub.f32 %v231, %v239
        %v248 = vsub.f32 %v232, %v240
        %v249 = vsub.f32 %v233, %v241
        %v250 = vsub.f32 %v234, %v242
        %v251 = vsub.f32 %v235, %v243
        %v252 = vsub.f32 %v236, %v244
        %v253 = vsub.f32 %v237, %v245
        %262 = vrot.lane.b32.xlu0 %v246, 1
        %v263 = vpop.permute.xlu0 %262
        %264 = vrot.lane.b32.xlu0 %v247, 1
        %v265 = vpop.permute.xlu0 %264
        %266 = vrot.lane.b32.xlu0 %v248, 1
        %v267 = vpop.permute.xlu0 %266
        %268 = vrot.lane.b32.xlu0 %v249, 1
        %v269 = vpop.permute.xlu0 %268
        %270 = vrot.lane.b32.xlu0 %v250, 1
        %v271 = vpop.permute.xlu0 %270
        %272 = vrot.lane.b32.xlu0 %v251, 1
        %v273 = vpop.permute.xlu0 %272
        %274 = vrot.lane.b32.xlu0 %v252, 1
        %v275 = vpop.permute.xlu0 %274
        %276 = vrot.lane.b32.xlu0 %v253, 1
        %v277 = vpop.permute.xlu0 %276
        %v286 = vsub.f32 %v246, %v263
        %v287 = vsub.f32 %v247, %v265
        %v288 = vsub.f32 %v248, %v267
        %v289 = vsub.f32 %v249, %v269
        %v290 = vsub.f32 %v250, %v271
        %v291 = vsub.f32 %v251, %v273
        %v292 = vsub.f32 %v252, %v275
        %v293 = vsub.f32 %v253, %v277
        %v294 = vld [vmem:[#allocation2] sm:$0x1]
        %v295 = vmul.f32 %v286, %v286
        %v296 = vmul.f32 %v287, %v287
        %v297 = vmul.f32 %v288, %v288
        %v298 = vmul.f32 %v289, %v289
        %v299 = vmul.f32 %v290, %v290
        %v300 = vmul.f32 %v291, %v291
        %v301 = vmul.f32 %v292, %v292
        %v302 = vmul.f32 %v293, %v293
        %vm303 = vcmask 130056
        %v304 = vsel %vm303, %v295, 0.0
        %v305 = vsel %vm303, %v297, 0.0
        %v306 = vadd.f32 %v304, %v305
        %v307 = vsel %vm303, %v299, 0.0
        %v308 = vadd.f32 %v306, %v307
        %v309 = vsel %vm303, %v301, 0.0
        %v310 = vadd.f32 %v308, %v309
        %v311 = vsel %vm303, %v296, 0.0
        %v312 = vsel %vm303, %v298, 0.0
        %v313 = vadd.f32 %v311, %v312
        %v314 = vsel %vm303, %v300, 0.0
        %v315 = vadd.f32 %v313, %v314
        %v316 = vsel %vm303, %v302, 0.0
        %v317 = vadd.f32 %v315, %v316
        %v318 = vsel %vm303, %v310, 0.0
        %v319 = vsel %vm303, %v317, 0.0
        %v320 = vadd.f32 %v318, %v319
        %v321 = vrot.slane %v320, 4
        %v322 = vadd.f32 %v320, %v321
        %v323 = vrot.slane %v322, 2
        %v324 = vadd.f32 %v322, %v323
        %v325 = vrot.slane %v324, 1
        %v326 = vadd.f32 %v324, %v325
        %v329 = vunpack.c.l.s4 1966171168
        %v330 = vunpack.c.0.s8 %v329
        %v331 = vlaneseq
        %v332 = vshrl.u32 %v331, 7
        %v333 = vsub.s32 %v330, %v332
        %v334 = vrot.slane %v326, %v333
        %v336 = vunpack.c.l.s4 1966171168
        %v337 = vunpack.c.0.s8 %v336
        %v338 = vlaneseq
        %v339 = vshrl.u32 %v338, 7
        %v340 = vsub.s32 %v337, %v339
        %v341 = vrot.slane %v334, %v340
        %342 = vrot.lane.b32.xlu0 %v341, 127
        %v343 = vpop.permute.xlu0 %342
        %v345 = vadd.f32 %v294, %v343
        %vm346 = vcmask 114688
        %347 = vst.msk [vmem:[#allocation2] sm:$0x1] %vm346, %v345
        %vm348 = vcmask 1040384
        %v349 = vrot.slane %v246, 7
        %v350 = vrot.slane %v247, 7
        %v351 = vsel %vm348, %v349, %v350
        %v352 = vrot.slane %v248, 7
        %v353 = vrot.slane %v249, 7
        %v354 = vsel %vm348, %v352, %v353
        %v355 = vrot.slane %v250, 7
        %v356 = vrot.slane %v251, 7
        %v357 = vsel %vm348, %v355, %v356
        %v358 = vrot.slane %v252, 7
        %v359 = vrot.slane %v253, 7
        %v360 = vsel %vm348, %v358, %v359
        %v369 = vsub.f32 %v246, %v349
        %v370 = vsub.f32 %v247, %v351
        %v371 = vsub.f32 %v248, %v352
        %v372 = vsub.f32 %v249, %v354
        %v373 = vsub.f32 %v250, %v355
        %v374 = vsub.f32 %v251, %v357
        %v375 = vsub.f32 %v252, %v358
        %v376 = vsub.f32 %v253, %v360
        %v377 = vld [vmem:[#allocation2] sm:$0x1]
        %v378 = vmul.f32 %v369, %v369
        %v379 = vmul.f32 %v370, %v370
        %v380 = vmul.f32 %v371, %v371
        %v381 = vmul.f32 %v372, %v372
        %v382 = vmul.f32 %v373, %v373
        %v383 = vmul.f32 %v374, %v374
        %v384 = vmul.f32 %v375, %v375
        %v385 = vmul.f32 %v376, %v376
        %vm386 = vcmask 130049
        %v387 = vsel %vm386, %v378, 0.0
        %v388 = vsel %vm386, %v380, 0.0
        %v389 = vadd.f32 %v387, %v388
        %v390 = vsel %vm386, %v382, 0.0
        %v391 = vadd.f32 %v389, %v390
        %v392 = vsel %vm386, %v384, 0.0
        %v393 = vadd.f32 %v391, %v392
        %vm394 = vcmask 130048
        %v395 = vsel %vm394, %v379, 0.0
        %v396 = vsel %vm394, %v381, 0.0
        %v397 = vadd.f32 %v395, %v396
        %v398 = vsel %vm394, %v383, 0.0
        %v399 = vadd.f32 %v397, %v398
        %v400 = vsel %vm394, %v385, 0.0
        %v401 = vadd.f32 %v399, %v400
        %vm404 = vcmask 1046528
        %v405 = vrot.slane %v393, 1
        %v406 = vrot.slane %v401, 1
        %v407 = vsel %vm404, %v405, %v406
        %v410 = vsel %vm394, %v407, 0.0
        %vm411 = vcmask 129024
        %v412 = vsel %vm411, %v406, 0.0
        %v413 = vadd.f32 %v410, %v412
        %v414 = vrot.slane %v413, 4
        %v415 = vadd.f32 %v413, %v414
        %v416 = vrot.slane %v415, 2
        %v417 = vadd.f32 %v415, %v416
        %v418 = vrot.slane %v417, 1
        %v419 = vadd.f32 %v417, %v418
        %v420 = vadd.f32 %v377, %v419
        %vm421 = vcmask 122880
        %422 = vst.msk [vmem:[#allocation2] sm:$0x1] %vm421, %v420
        // Predicated region
        $region41: #{tpu_custom_call.1} parent=27 // pred_check
          %p423 = pneg %p224
        $region42: #{tpu_custom_call.1} parent=27 // pred_check_branch
          %425 = sbr.rel (%p423) target = $region44
        $region43: #{tpu_custom_call.1} parent=27 // pred_region
          %v426 = vld [vmem:[#allocation2] sm:$0x1]
          %v427 = vsel %vm421, %v426, 0.0
          %428 = vadd.xlane.f32.xlu0 %v427
          %v429 = vpop.xlane.xlu0 %428
          %v430 = vrot.slane %v429, 4
          %v431 = vadd.f32 %v429, %v430
          %v432 = vrot.slane %v431, 2
          %v433 = vadd.f32 %v431, %v432
          %v434 = vrot.slane %v433, 1
          %v435 = vadd.f32 %v433, %v434
          %s436 = vtos %v435
          %v437 = vstv %s436
          %v438 = vadd.f32 %v437, 0.0
          %vm439 = vcmask 0
          %440 = vst.msk [vmem:[%s223] sm:$0x1] %vm439, %v438
        $region44: #{tpu_custom_call.1} parent=27 // pred_fallthru
          _
        %p441 = scmp.lt.s32.totalorder %s23, 1
        %s442 = scalar_select %p441, %s23, 1
        %s443 = scalar_lea.vmem %s2, %s442
        // Predicated region
        $region45: #{tpu_custom_call.1} parent=27 // pred_check
          %p444 = pneg %p105
        $region46: #{tpu_custom_call.1} parent=27 // pred_check_branch
          %446 = sbr.rel (%p444) target = $region48
        $region47: #{tpu_custom_call.1} parent=27 // pred_region
          _
        $region48: #{tpu_custom_call.1} parent=27 // pred_fallthru
          _
      $region28: #{tpu_custom_call.1} parent=5 // pred_fallthru
        _
      %p447 = scmp.le.s32.totalorder 2, %s14
      // Predicated region
      $region49: #{tpu_custom_call.1} parent=5 // pred_check
        %p448 = pneg %p447
      $region50: #{tpu_custom_call.1} parent=5 // pred_check_branch
        %450 = sbr.rel (%p448) target = $region52
      $region51: #{tpu_custom_call.1} parent=5 // pred_region
        %s451 = ssub.s32 %s14, 2
        // Predicated region
        $region53: #{tpu_custom_call.1} parent=51 // pred_check
          %p452 = pneg %p111
        $region54: #{tpu_custom_call.1} parent=51 // pred_check_branch
          %454 = sbr.rel (%p452) target = $region56
        $region55: #{tpu_custom_call.1} parent=51 // pred_region
          %p455 = scmp.lt.s32.totalorder %s25, 1
          %s456 = scalar_select %p455, %s25, 1
          %s457 = scalar_lea.vmem %s2, %s456
        $region56: #{tpu_custom_call.1} parent=51 // pred_fallthru
          _
      $region52: #{tpu_custom_call.1} parent=5 // pred_fallthru
        _
    $region6: #{tpu_custom_call.1} parent=1 // loop_footer
      %s18 = sadd.s32 1, %s14
    $region7: #{tpu_custom_call.1} parent=1 // loop_footer_branch
      %13 = sbr.rel target = $region3
    $region8: #{tpu_custom_call.1} parent=1 // loop_exit
      _
    %458 = vsyncpa [#allocation4], 1
    %s459 = scalar_lea.sflag [#allocation4], 1
    %460 = vsyncpa %s459, 1
    %461 = vsyncpa [#allocation6], 1
    %s462 = scalar_lea.sflag [#allocation6], 1
    %463 = vsyncpa %s462, 1

</llo_original>
